<compile_context>
chip_gen: v7x
topology: tpu7x:2x2x1
jax: 0.10.0
libtpu: 0.0.40
codegen_flags: <defaults>
</compile_context>

<pallas_src>
import functools

import jax
import jax.numpy as jnp
from jax.experimental import pallas as pl
from jax.experimental.pallas import tpu as pltpu


def _conv1x1_kernel(x_ref, w_ref, b_ref, o_ref):
    # x_ref: (C_in, TS)   channels in sublanes, spatial positions in lanes
    # w_ref: (C_out, C_in)
    # b_ref: (C_out, 1)
    # o_ref: (C_out, TS)  lane-dense output slab
    acc = jnp.dot(w_ref[...], x_ref[...], preferred_element_type=jnp.float32)
    o_ref[...] = (acc + b_ref[...].astype(jnp.float32)).astype(o_ref.dtype)


def _pick_spatial_tile(s, ts_max):
    """Spatial tile: full extent if it fits, else a large multiple of 128."""
    if s <= ts_max:
        return s  # block == full dim satisfies the layout rule for any s
    return max((ts_max // 128) * 128, 128)


@functools.partial(jax.jit, static_argnames=("ts_max",))
def outconv3d_forward(x, weight, bias, *, ts_max=8192):
    """1x1x1 Conv3d forward.

    x:      (N, C_in, D, H, W) float32
    weight: (C_out, C_in, 1, 1, 1)
    bias:   (C_out,)
    returns (N, C_out, D, H, W)
    """
    n, c_in, d, h, w = x.shape
    c_out = weight.shape[0]
    s = d * h * w

    # All reshapes below are metadata-only (contiguous trailing dims merged):
    # no extra HBM passes, no transposes.
    x_flat = x.reshape(n, c_in, s)                       # (N, C_in, S)
    w_mat = weight.reshape(c_out, c_in).astype(x.dtype)  # (C_out, C_in)
    b_col = bias.reshape(c_out, 1).astype(x.dtype)       # (C_out, 1)

    ts = _pick_spatial_tile(s, ts_max)
    grid = (n, pl.cdiv(s, ts))

    out_flat = pl.pallas_call(
        _conv1x1_kernel,
        out_shape=jax.ShapeDtypeStruct((n, c_out, s), x.dtype),
        grid_spec=pltpu.PrefetchScalarGridSpec(
            num_scalar_prefetch=0,
            grid=grid,
            in_specs=[
                # batch dim squeezed; spatial tile in lanes.
                pl.BlockSpec((None, c_in, ts), lambda i, j: (i, 0, j)),
                # weight & bias: tiny, grid-invariant -> stay resident in VMEM.
                pl.BlockSpec((c_out, c_in), lambda i, j: (0, 0)),
                pl.BlockSpec((c_out, 1), lambda i, j: (0, 0)),
            ],
            out_specs=pl.BlockSpec((None, c_out, ts), lambda i, j: (i, 0, j)),
        ),
        compiler_params=pltpu.CompilerParams(
            dimension_semantics=("parallel", "parallel"),
            vmem_limit_bytes=32 * 1024 * 1024,  # safe on v5e/v6e/v7x
        ),
    )(x_flat, w_mat, b_col)

    return out_flat.reshape(n, c_out, d, h, w)


def init_params(key, in_ch, out_ch):
    """Deterministic init matching nn.Conv3d(in_ch, out_ch, 1) parameter shapes."""
    k_w, k_b = jax.random.split(key)
    fan_in = in_ch * 1 * 1 * 1
    bound = 1.0 / jnp.sqrt(fan_in)
    weight = jax.random.uniform(
        k_w, (out_ch, in_ch, 1, 1, 1), jnp.float32, -bound, bound
    )
    bias = jax.random.uniform(k_b, (out_ch,), jnp.float32, -bound, bound)
    return weight, bias


if __name__ == "__main__":
    key = jax.random.PRNGKey(0)
    k_x, k_p = jax.random.split(key)

    N, C_IN, C_OUT, D, H, W = 2, 4, 3, 8, 8, 8
    x = jax.random.normal(k_x, (N, C_IN, D, H, W), jnp.float32)
    weight, bias = init_params(k_p, C_IN, C_OUT)

    out = outconv3d_forward(x, weight, bias)
    out = jax.block_until_ready(out)

    # Cross-check against a plain-JAX reference (einsum == 1x1x1 conv).
    ref = jnp.einsum("ncdhw,oc->nodhw", x, weight.reshape(C_OUT, C_IN)) + bias[
        None, :, None, None, None
    ]
    assert out.shape == (N, C_OUT, D, H, W)
    assert jnp.allclose(out, ref, atol=1e-5, rtol=1e-5)

    print("KERNEL_OK")
</pallas_src>

<mosaic_0001>
module attributes {stable_mosaic.version = 11 : i64} {
  func.func @_conv1x1_kernel(%arg0: i32, %arg1: i32, %arg2: memref<1x4x512xf32, #tpu.memory_space<vmem>>, %arg3: memref<3x4xf32, #tpu.memory_space<vmem>>, %arg4: memref<3x1xf32, #tpu.memory_space<vmem>>, %arg5: memref<1x3x512xf32, #tpu.memory_space<vmem>>) attributes {dimension_semantics = [#tpu.dimension_semantics<parallel>, #tpu.dimension_semantics<parallel>], iteration_bounds = array<i64: 2, 1>, scalar_prefetch = 0 : i64, scratch_operands = 0 : i64, tpu.core_type = #tpu.core_type<tc>, window_params = [{transform_indices = @transform_0, window_bounds = array<i64: 1, 4, 512>}, {pipeline_mode = #tpu.pipeline_mode<synchronous>, transform_indices = @transform_1, window_bounds = array<i64: 3, 4>}, {pipeline_mode = #tpu.pipeline_mode<synchronous>, transform_indices = @transform_2, window_bounds = array<i64: 3, 1>}, {transform_indices = @transform_3, window_bounds = array<i64: 1, 3, 512>}]} {
    %c0 = arith.constant 0 : index
    %c0_0 = arith.constant 0 : index
    %0 = vector.load %arg3[%c0, %c0_0] : memref<3x4xf32, #tpu.memory_space<vmem>>, vector<3x4xf32>
    %c0_1 = arith.constant 0 : index
    %c0_2 = arith.constant 0 : index
    %c0_3 = arith.constant 0 : index
    %1 = vector.load %arg2[%c0_1, %c0_2, %c0_3] : memref<1x4x512xf32, #tpu.memory_space<vmem>>, vector<1x4x512xf32>
    %2 = vector.shape_cast %1 : vector<1x4x512xf32> to vector<4x512xf32>
    %cst = arith.constant dense<0.000000e+00> : vector<3x512xf32>
    %3 = tpu.matmul %0, %2, %cst {dimension_numbers = #tpu.dot_dimension_numbers<[1], [0], [0], [1], [0, 0, 1, 1], [], []>} : vector<3x4xf32>, vector<4x512xf32>, vector<3x512xf32> -> vector<3x512xf32>
    %c0_4 = arith.constant 0 : index
    %c0_5 = arith.constant 0 : index
    %4 = vector.load %arg4[%c0_4, %c0_5] : memref<3x1xf32, #tpu.memory_space<vmem>>, vector<3x1xf32>
    %5 = vector.broadcast %4 : vector<3x1xf32> to vector<3x512xf32>
    %6 = arith.addf %3, %5 : vector<3x512xf32>
    %c0_6 = arith.constant 0 : index
    %c0_7 = arith.constant 0 : index
    %c0_8 = arith.constant 0 : index
    %7 = vector.load %arg5[%c0_6, %c0_7, %c0_8] : memref<1x3x512xf32, #tpu.memory_space<vmem>>, vector<1x3x512xf32>
    %8 = vector.shape_cast %7 : vector<1x3x512xf32> to vector<3x512xf32>
    %9 = vector.shape_cast %6 : vector<3x512xf32> to vector<1x3x512xf32>
    tpu.vector_store %arg5[%c0_6, %c0_7, %c0_8], %9 {strides = array<i32>} : memref<1x3x512xf32, #tpu.memory_space<vmem>>, vector<1x3x512xf32>,
    return
  }
  func.func @transform_0(%arg0: i32, %arg1: i32) -> (i32, i32, i32) {
    %c0_i32 = arith.constant 0 : i32
    %c0_i32_0 = arith.constant 0 : i32
    return %arg0, %c0_i32, %arg1 : i32, i32, i32
  }
  func.func @transform_1(%arg0: i32, %arg1: i32) -> (i32, i32) {
    %c0_i32 = arith.constant 0 : i32
    %c0_i32_0 = arith.constant 0 : i32
    %c0_i32_1 = arith.constant 0 : i32
    return %c0_i32, %c0_i32_0 : i32, i32
  }
  func.func @transform_2(%arg0: i32, %arg1: i32) -> (i32, i32) {
    %c0_i32 = arith.constant 0 : i32
    %c0_i32_0 = arith.constant 0 : i32
    %c0_i32_1 = arith.constant 0 : i32
    return %c0_i32, %c0_i32_0 : i32, i32
  }
  func.func @transform_3(%arg0: i32, %arg1: i32) -> (i32, i32, i32) {
    %c0_i32 = arith.constant 0 : i32
    %c0_i32_0 = arith.constant 0 : i32
    return %arg0, %c0_i32, %arg1 : i32, i32, i32
  }
}

</mosaic_0001>

<llo_original>
// kernel: outconv3d_forward.1
$region0: #{outconv3d_forward.1}
  #allocation0 [shape = 'u32[]', space=smem, size = 0x4, offset = 0x4, fixed_abs, tag = 'smem constant byte address 0x4 - core index']
  #allocation1 [shape = 'u32[144,128]{1,0:T(1,128)}', space=vmem, size = 0x12000, scoped, tag = 'internal scratch']
  %s0 = inlined_call_operand.vmem [shape: f32[2,4,512], index: 0, kind: input, shape index: {}]
  %s1 = inlined_call_operand.vmem [shape: f32[3,4], index: 1, kind: input, shape index: {}]
  %s2 = inlined_call_operand.vmem [shape: f32[3,1], index: 2, kind: input, shape index: {}]
  %s3 = inlined_call_operand.vmem [shape: f32[2,3,512], index: 3, kind: output, shape index: {}]
  %s4 = sld [smem:[#allocation0]]
  $region45: #{outconv3d_forward.1} parent=0
    _
  %s6 = ssub.s32 1, %s4
  %s7 = scalar_select 0, %s6, %s4
  loop: start=0, step=1, limit=4
  $region2: #{outconv3d_forward.1} parent=0 // loop_pre_header
    _
  $region3: #{outconv3d_forward.1} parent=0 // loop_header
    %s9 = sphi 0, %s13
    %p10 = scmp.ge.s32.totalorder %s9, 4
    %s16 = sphi 0, %s28
    %s17 = sphi 0, %s24
    %s18 = sphi 0, %s16
    %s19 = sphi 0, %s17
    %s20 = sphi 0, %s18
    %s21 = sphi 0, %s19
    %s33 = sphi 0, %s35
    %s36 = sphi 0, %s33
    %s37 = sphi 0, %s36
    %s53 = sphi 0, %s37
    %s57 = sphi 0, %s57
    %s59 = sphi 0, %s57
    %s60 = sphi 0, %s59
    %s74 = sphi 0, %s60
    %s78 = sphi 0, %s78
    %s80 = sphi 0, %s78
    %s81 = sphi 0, %s80
    %s95 = sphi 0, %s81
    %s103 = sphi 0, %s105
    %s106 = sphi 0, %s103
    %s107 = sphi 0, %s106
    %s123 = sphi 0, %s107
  $region4: #{outconv3d_forward.1} parent=0 // loop_header_branch
    %12 = sbr.rel (%p10) target = $region8
  $region5: #{outconv3d_forward.1} parent=0 // loop_body
    %s14 = ssub.s32 %s9, 1
    %s15 = ssub.s32 %s9, 2
    %s22 = sadd.s32 1, %s17
    %p23 = scmp.ge.s32.totalorder %s22, 1
    %s24 = scalar_select %p23, 0, %s22
    %s25 = sadd.s32 1, %s16
    %s26 = scalar_select %p23, %s25, %s16
    %p27 = scmp.ge.s32.totalorder %s26, 2
    %s28 = scalar_select %p27, 0, %s26
    %s29 = ssub.s32 %s16, %s28
    %s30 = ssub.s32 %s17, %s24
    %s31 = sor.u32 %s29, %s30
    %p32 = scmp.eq.s32.totalorder %s31, 0
    %s34 = sadd.s32 %s33, 1
    %s35 = scalar_select %p32, %s33, %s34
    %p38 = pneg %p32
    %p39 = scmp.eq.s32.totalorder %s9, 1
    %p40 = por %p38, %p39
    %p41 = scmp.ne.s32.totalorder %s33, %s36
    %p42 = scmp.eq.s32.totalorder %s9, 0
    %p43 = por %p41, %p42
    %p44 = scmp.ne.s32.totalorder %s33, %s36
    %p45 = scmp.eq.s32.totalorder %s14, 1
    %p46 = por %p44, %p45
    %p47 = scmp.ne.s32.totalorder %s36, %s37
    %p48 = scmp.eq.s32.totalorder %s14, 0
    %p49 = por %p47, %p48
    %p50 = scmp.ne.s32.totalorder %s36, %s37
    %p51 = scmp.eq.s32.totalorder %s15, 1
    %p52 = por %p50, %p51
    %p54 = scmp.ne.s32.totalorder %s37, %s53
    %p55 = scmp.eq.s32.totalorder %s15, 0
    %p56 = por %p54, %p55
    %s58 = sadd.s32 %s57, 1
    %p61 = scmp.eq.s32.totalorder %s9, 1
    %p62 = scmp.ne.s32.totalorder %s57, %s59
    %p63 = scmp.eq.s32.totalorder %s9, 0
    %p64 = por %p62, %p63
    %p65 = scmp.ne.s32.totalorder %s57, %s59
    %p66 = scmp.eq.s32.totalorder %s14, 1
    %p67 = por %p65, %p66
    %p68 = scmp.ne.s32.totalorder %s59, %s60
    %p69 = scmp.eq.s32.totalorder %s14, 0
    %p70 = por %p68, %p69
    %p71 = scmp.ne.s32.totalorder %s59, %s60
    %p72 = scmp.eq.s32.totalorder %s15, 1
    %p73 = por %p71, %p72
    %p75 = scmp.ne.s32.totalorder %s60, %s74
    %p76 = scmp.eq.s32.totalorder %s15, 0
    %p77 = por %p75, %p76
    %s79 = sadd.s32 %s78, 1
    %p82 = scmp.eq.s32.totalorder %s9, 1
    %p83 = scmp.ne.s32.totalorder %s78, %s80
    %p84 = scmp.eq.s32.totalorder %s9, 0
    %p85 = por %p83, %p84
    %p86 = scmp.ne.s32.totalorder %s78, %s80
    %p87 = scmp.eq.s32.totalorder %s14, 1
    %p88 = por %p86, %p87
    %p89 = scmp.ne.s32.totalorder %s80, %s81
    %p90 = scmp.eq.s32.totalorder %s14, 0
    %p91 = por %p89, %p90
    %p92 = scmp.ne.s32.totalorder %s80, %s81
    %p93 = scmp.eq.s32.totalorder %s15, 1
    %p94 = por %p92, %p93
    %p96 = scmp.ne.s32.totalorder %s81, %s95
    %p97 = scmp.eq.s32.totalorder %s15, 0
    %p98 = por %p96, %p97
    %s99 = ssub.s32 %s16, %s28
    %s100 = ssub.s32 %s17, %s24
    %s101 = sor.u32 %s99, %s100
    %p102 = scmp.eq.s32.totalorder %s101, 0
    %s104 = sadd.s32 %s103, 1
    %s105 = scalar_select %p102, %s103, %s104
    %p108 = pneg %p102
    %p109 = scmp.eq.s32.totalorder %s9, 1
    %p110 = por %p108, %p109
    %p111 = scmp.ne.s32.totalorder %s103, %s106
    %p112 = scmp.eq.s32.totalorder %s9, 0
    %p113 = por %p111, %p112
    %p114 = scmp.ne.s32.totalorder %s103, %s106
    %p115 = scmp.eq.s32.totalorder %s14, 1
    %p116 = por %p114, %p115
    %p117 = scmp.ne.s32.totalorder %s106, %s107
    %p118 = scmp.eq.s32.totalorder %s14, 0
    %p119 = por %p117, %p118
    %p120 = scmp.ne.s32.totalorder %s106, %s107
    %p121 = scmp.eq.s32.totalorder %s15, 1
    %p122 = por %p120, %p121
    %p124 = scmp.ne.s32.totalorder %s107, %s123
    %p125 = scmp.eq.s32.totalorder %s15, 0
    %p126 = por %p124, %p125
    %p127 = scmp.le.s32.totalorder 1, %s9
    %p128 = scmp.lt.s32.totalorder %s9, 3
    %p129 = pnand %p127, %p128
    %p130 = pneg %p129
    // Predicated region
    $region9: #{outconv3d_forward.1} parent=5 // pred_check
      _
    $region10: #{outconv3d_forward.1} parent=5 // pred_check_branch
      %132 = sbr.rel (%p129) target = $region12
    $region11: #{outconv3d_forward.1} parent=5 // pred_region
      %s133 = ssub.s32 %s9, 1
      // Predicated region
      $region13: #{outconv3d_forward.1} parent=11 // pred_check
        %p134 = pneg %p70
      $region14: #{outconv3d_forward.1} parent=11 // pred_check_branch
        %136 = sbr.rel (%p134) target = $region16
      $region15: #{outconv3d_forward.1} parent=11 // pred_region
        _
      $region16: #{outconv3d_forward.1} parent=11 // pred_fallthru
        _
      // Predicated region
      $region17: #{outconv3d_forward.1} parent=11 // pred_check
        %p137 = pneg %p91
      $region18: #{outconv3d_forward.1} parent=11 // pred_check_branch
        %139 = sbr.rel (%p137) target = $region20
      $region19: #{outconv3d_forward.1} parent=11 // pred_region
        _
      $region20: #{outconv3d_forward.1} parent=11 // pred_fallthru
        _
    $region12: #{outconv3d_forward.1} parent=5 // pred_fallthru
      _
    %p140 = scmp.lt.s32.totalorder %s9, 2
    // Predicated region
    $region21: #{outconv3d_forward.1} parent=5 // pred_check
      %p141 = pneg %p140
    $region22: #{outconv3d_forward.1} parent=5 // pred_check_branch
      %143 = sbr.rel (%p141) target = $region24
    $region23: #{outconv3d_forward.1} parent=5 // pred_region
      // Predicated region
      $region25: #{outconv3d_forward.1} parent=23 // pred_check
        %p144 = pneg %p43
      $region26: #{outconv3d_forward.1} parent=23 // pred_check_branch
        %146 = sbr.rel (%p144) target = $region28
      $region27: #{outconv3d_forward.1} parent=23 // pred_region
        %s147 = smul.u32 4, %s17
        %p148 = scmp.lt.s32.totalorder %s16, 1
        %s149 = scalar_select %p148, %s16, 1
        %p150 = scmp.lt.s32.totalorder %s147, 3
        %s151 = scalar_select %p150, %s147, 3
        %s152 = smul.addr %s149, 4
        %s153 = sadd.s32 %s151, %s152
        %s154 = smul.addr %s153, 4
        %s155 = scalar_lea.vmem %s0, %s154
        %s156 = smul.u32 4, %s17
      $region28: #{outconv3d_forward.1} parent=23 // pred_fallthru
        _
    $region24: #{outconv3d_forward.1} parent=5 // pred_fallthru
      _
    %p157 = scmp.le.s32.totalorder 1, %s9
    %p158 = scmp.lt.s32.totalorder %s9, 3
    %p159 = pnand %p157, %p158
    %p160 = pneg %p159
    // Predicated region
    $region29: #{outconv3d_forward.1} parent=5 // pred_check
      _
    $region30: #{outconv3d_forward.1} parent=5 // pred_check_branch
      %162 = sbr.rel (%p159) target = $region32
    $region31: #{outconv3d_forward.1} parent=5 // pred_region
      %s163 = ssub.s32 %s9, 1
      %s164 = smul.u32 4, %s19
      %p165 = scmp.lt.s32.totalorder %s18, 1
      %s166 = scalar_select %p165, %s18, 1
      %p167 = scmp.lt.s32.totalorder %s164, 3
      %s168 = scalar_select %p167, %s164, 3
      %s169 = smul.addr %s166, 4
      %s170 = sadd.s32 %s168, %s169
      %s171 = smul.addr %s170, 4
      %s172 = scalar_lea.vmem %s0, %s171
      %p173 = pneg %p49
      %p174 = pneg %p46
      %p175 = pneg %p70
      %p176 = pneg %p67
      %p177 = pneg %p91
      %p178 = pneg %p88
      %p179 = pneg %p119
      %p180 = pneg %p116
      %s181 = smul.u32 4, %s19
      %p182 = scmp.lt.s32.totalorder %s18, 1
      %s183 = scalar_select %p182, %s18, 1
      %p184 = scmp.lt.s32.totalorder %s181, 3
      %s185 = scalar_select %p184, %s181, 3
      %s186 = smul.addr %s183, 4
      %s187 = sadd.s32 %s185, %s186
      %s188 = smul.addr %s187, 4
      %s189 = scalar_lea.vmem %s3, %s188
      %s190 = smul.u32 4, %s19
      %p191 = scmp.lt.s32.totalorder %s18, 1
      %s192 = scalar_select %p191, %s18, 1
      %p193 = scmp.lt.s32.totalorder %s190, 3
      %s194 = scalar_select %p193, %s190, 3
      %s195 = smul.addr %s192, 4
      %s196 = sadd.s32 %s194, %s195
      %s197 = smul.addr %s196, 4
      %s198 = scalar_lea.vmem %s0, %s197
      %s199 = smul.u32 4, %s19
      %s200 = smul.u32 4, %s19
      %p201 = scmp.lt.s32.totalorder %s18, 1
      %s202 = scalar_select %p201, %s18, 1
      %p203 = scmp.lt.s32.totalorder %s200, 3
      %s204 = scalar_select %p203, %s200, 3
      %s205 = smul.addr %s202, 4
      %s206 = sadd.s32 %s204, %s205
      %s207 = smul.addr %s206, 4
      %s208 = scalar_lea.vmem %s3, %s207
      %s209 = smul.u32 4, %s19
      %v210 = vld [vmem:[%s1] sm:$0x7]
      %v211 = vld [vmem:[%s198] sm:$0xff]
      %v212 = vld [vmem:[%s198 + $0x8] sm:$0xff]
      %v213 = vld [vmem:[%s2] sm:$0x7]
      %215 = vset.pattern.permute.xlu0 0
      %216 = vperm.xlu0 %215, %v213
      %v217 = vpop.permute.xlu0 %216
      %v221 = vcombine.high %v211, %v211
      %v222 = vcombine.high %v212, %v212
      %vm223 = vcmask 31744
      %v225 = vsel %vm223, %v210, 0
      %vm227 = vcmask 1043456
      %v228 = vsel %vm227, %v211, 0
      %v230 = vsel %vm227, %v221, 0
      %v232 = vsel %vm227, %v212, 0
      %v234 = vsel %vm227, %v222, 0
      %236 = vmatprep.subr.mxu0 %v230
      %237 = vmatpush1.msra.mxu0 %v228
      %238 = vmatprep.subr.mxu0 0.0
      %239 = vmatpush1.msra.mxu0 0.0
      %240 = vmatprep.subr.mxu0 0.0
      %241 = vmatpush1.msra.mxu0 0.0
      %242 = vmatprep.subr.mxu0 0.0
      %243 = vmatpush1.msra.mxu0 0.0
      %244 = vmatprep.subr.mxu0 0.0
      %245 = vmatpush1.msra.mxu0 0.0
      %246 = vmatprep.subr.mxu0 0.0
      %247 = vmatpush1.msra.mxu0 0.0
      %248 = vmatprep.subr.mxu0 0.0
      %249 = vmatpush1.msra.mxu0 0.0
      %250 = vmatprep.subr.mxu0 0.0
      %251 = vmatpush1.msra.mxu0 0.0
      %252 = vmatprep.subr.mxu0 0.0
      %253 = vmatpush1.msra.mxu0 0.0
      %254 = vmatprep.subr.mxu0 0.0
      %255 = vmatpush1.msra.mxu0 0.0
      %256 = vmatprep.subr.mxu0 0.0
      %257 = vmatpush1.msra.mxu0 0.0
      %258 = vmatprep.subr.mxu0 0.0
      %259 = vmatpush1.msra.mxu0 0.0
      %260 = vmatprep.subr.mxu0 0.0
      %261 = vmatpush1.msra.mxu0 0.0
      %262 = vmatprep.subr.mxu0 0.0
      %263 = vmatpush1.msra.mxu0 0.0
      %264 = vmatprep.subr.mxu0 0.0
      %265 = vmatpush1.msra.mxu0 0.0
      %266 = vmatprep.subr.mxu0 0.0
      %267 = vmatpush1.msra.mxu0 0.0
      %268 = vmatprep.subr.mxu0 0.0
      %269 = vmatpush1.msra.mxu0 0.0
      %270 = vmatprep.subr.mxu0 0.0
      %271 = vmatpush1.msra.mxu0 0.0
      %272 = vmatprep.subr.mxu0 0.0
      %273 = vmatpush1.msra.mxu0 0.0
      %274 = vmatprep.subr.mxu0 0.0
      %275 = vmatpush1.msra.mxu0 0.0
      %276 = vmatprep.subr.mxu0 0.0
      %277 = vmatpush1.msra.mxu0 0.0
      %278 = vmatprep.subr.mxu0 0.0
      %279 = vmatpush1.msra.mxu0 0.0
      %280 = vmatprep.subr.mxu0 0.0
      %281 = vmatpush1.msra.mxu0 0.0
      %282 = vmatprep.subr.mxu0 0.0
      %283 = vmatpush1.msra.mxu0 0.0
      %284 = vmatprep.subr.mxu0 0.0
      %285 = vmatpush1.msra.mxu0 0.0
      %286 = vmatprep.subr.mxu0 0.0
      %287 = vmatpush1.msra.mxu0 0.0
      %288 = vmatprep.subr.mxu0 0.0
      %289 = vmatpush1.msra.mxu0 0.0
      %290 = vmatprep.subr.mxu0 0.0
      %291 = vmatpush1.msra.mxu0 0.0
      %292 = vmatprep.subr.mxu0 0.0
      %293 = vmatpush1.msra.mxu0 0.0
      %294 = vmatprep.subr.mxu0 0.0
      %295 = vmatpush1.msra.mxu0 0.0
      %296 = vmatprep.subr.mxu0 0.0
      %297 = vmatpush1.msra.mxu0 0.0
      %298 = vmatprep.subr.mxu0 0.0
      %299 = vmatpush1.msra.mxu0 0.0
      %300 = vmatprep.mubr.f32.mxu0 0.0
      %301 = vmatmul.mubr.f32.gmra.mrb[0].mxu0 %v225
      %v302 = vpop.f32.mrb[0].mxu0
      %v303 = vadd.f32 %v217, %v302
      %v304 = vpop.f32.mrb[0].mxu0
      %v305 = vadd.f32 %v217, %v304
      %306 = vdwg.mxu0
      %307 = vmatprep.subr.mxu0 %v234
      %308 = vmatpush1.msra.mxu0 %v232
      %309 = vmatprep.subr.mxu0 0.0
      %310 = vmatpush1.msra.mxu0 0.0
      %311 = vmatprep.subr.mxu0 0.0
      %312 = vmatpush1.msra.mxu0 0.0
      %313 = vmatprep.subr.mxu0 0.0
      %314 = vmatpush1.msra.mxu0 0.0
      %315 = vmatprep.subr.mxu0 0.0
      %316 = vmatpush1.msra.mxu0 0.0
      %317 = vmatprep.subr.mxu0 0.0
      %318 = vmatpush1.msra.mxu0 0.0
      %319 = vmatprep.subr.mxu0 0.0
      %320 = vmatpush1.msra.mxu0 0.0
      %321 = vmatprep.subr.mxu0 0.0
      %322 = vmatpush1.msra.mxu0 0.0
      %323 = vmatprep.subr.mxu0 0.0
      %324 = vmatpush1.msra.mxu0 0.0
      %325 = vmatprep.subr.mxu0 0.0
      %326 = vmatpush1.msra.mxu0 0.0
      %327 = vmatprep.subr.mxu0 0.0
      %328 = vmatpush1.msra.mxu0 0.0
      %329 = vmatprep.subr.mxu0 0.0
      %330 = vmatpush1.msra.mxu0 0.0
      %331 = vmatprep.subr.mxu0 0.0
      %332 = vmatpush1.msra.mxu0 0.0
      %333 = vmatprep.subr.mxu0 0.0
      %334 = vmatpush1.msra.mxu0 0.0
      %335 = vmatprep.subr.mxu0 0.0
      %336 = vmatpush1.msra.mxu0 0.0
      %337 = vmatprep.subr.mxu0 0.0
      %338 = vmatpush1.msra.mxu0 0.0
      %339 = vmatprep.subr.mxu0 0.0
      %340 = vmatpush1.msra.mxu0 0.0
      %341 = vmatprep.subr.mxu0 0.0
      %342 = vmatpush1.msra.mxu0 0.0
      %343 = vmatprep.subr.mxu0 0.0
      %344 = vmatpush1.msra.mxu0 0.0
      %345 = vmatprep.subr.mxu0 0.0
      %346 = vmatpush1.msra.mxu0 0.0
      %347 = vmatprep.subr.mxu0 0.0
      %348 = vmatpush1.msra.mxu0 0.0
      %349 = vmatprep.subr.mxu0 0.0
      %350 = vmatpush1.msra.mxu0 0.0
      %351 = vmatprep.subr.mxu0 0.0
      %352 = vmatpush1.msra.mxu0 0.0
      %353 = vmatprep.subr.mxu0 0.0
      %354 = vmatpush1.msra.mxu0 0.0
      %355 = vmatprep.subr.mxu0 0.0
      %356 = vmatpush1.msra.mxu0 0.0
      %357 = vmatprep.subr.mxu0 0.0
      %358 = vmatpush1.msra.mxu0 0.0
      %359 = vmatprep.subr.mxu0 0.0
      %360 = vmatpush1.msra.mxu0 0.0
      %361 = vmatprep.subr.mxu0 0.0
      %362 = vmatpush1.msra.mxu0 0.0
      %363 = vmatprep.subr.mxu0 0.0
      %364 = vmatpush1.msra.mxu0 0.0
      %365 = vmatprep.subr.mxu0 0.0
      %366 = vmatpush1.msra.mxu0 0.0
      %367 = vmatprep.subr.mxu0 0.0
      %368 = vmatpush1.msra.mxu0 0.0
      %369 = vmatprep.subr.mxu0 0.0
      %370 = vmatpush1.msra.mxu0 0.0
      %371 = vmatprep.mubr.f32.mxu0 0.0
      %372 = vmatmul.mubr.f32.gmra.mrb[0].mxu0 %v225
      %v373 = vpop.f32.mrb[0].mxu0
      %v374 = vadd.f32 %v217, %v373
      %v375 = vpop.f32.mrb[0].mxu0
      %v376 = vadd.f32 %v217, %v375
      %377 = vdwg.mxu0
      %v382 = vcombine.low %v303, %v305
      %v383 = vcombine.low %v374, %v376
      %386 = vst [vmem:[%s208] sm:$0x77] %v382
      %387 = vst [vmem:[%s208 + $0x8] sm:$0x77] %v383
      %s388 = smul.u32 4, %s19
      %p389 = scmp.lt.s32.totalorder %s18, 1
      %s390 = scalar_select %p389, %s18, 1
      %p391 = scmp.lt.s32.totalorder %s388, 3
      %s392 = scalar_select %p391, %s388, 3
      %s393 = smul.addr %s390, 4
      %s394 = sadd.s32 %s392, %s393
      %s395 = smul.addr %s394, 4
      %s396 = scalar_lea.vmem %s3, %s395
      // Predicated region
      $region33: #{outconv3d_forward.1} parent=31 // pred_check
        %p397 = pneg %p116
      $region34: #{outconv3d_forward.1} parent=31 // pred_check_branch
        %399 = sbr.rel (%p397) target = $region36
      $region35: #{outconv3d_forward.1} parent=31 // pred_region
        %s400 = smul.u32 4, %s19
      $region36: #{outconv3d_forward.1} parent=31 // pred_fallthru
        _
    $region32: #{outconv3d_forward.1} parent=5 // pred_fallthru
      _
    %p401 = scmp.le.s32.totalorder 2, %s9
    // Predicated region
    $region37: #{outconv3d_forward.1} parent=5 // pred_check
      %p402 = pneg %p401
    $region38: #{outconv3d_forward.1} parent=5 // pred_check_branch
      %404 = sbr.rel (%p402) target = $region40
    $region39: #{outconv3d_forward.1} parent=5 // pred_region
      %s405 = ssub.s32 %s9, 2
      // Predicated region
      $region41: #{outconv3d_forward.1} parent=39 // pred_check
        %p406 = pneg %p122
      $region42: #{outconv3d_forward.1} parent=39 // pred_check_branch
        %408 = sbr.rel (%p406) target = $region44
      $region43: #{outconv3d_forward.1} parent=39 // pred_region
        %s409 = smul.u32 4, %s21
        %p410 = scmp.lt.s32.totalorder %s20, 1
        %s411 = scalar_select %p410, %s20, 1
        %p412 = scmp.lt.s32.totalorder %s409, 3
        %s413 = scalar_select %p412, %s409, 3
        %s414 = smul.addr %s411, 4
        %s415 = sadd.s32 %s413, %s414
        %s416 = smul.addr %s415, 4
        %s417 = scalar_lea.vmem %s3, %s416
      $region44: #{outconv3d_forward.1} parent=39 // pred_fallthru
        _
    $region40: #{outconv3d_forward.1} parent=5 // pred_fallthru
      _
  $region6: #{outconv3d_forward.1} parent=0 // loop_footer
    %s13 = sadd.s32 1, %s9
  $region7: #{outconv3d_forward.1} parent=0 // loop_footer_branch
    %8 = sbr.rel target = $region3
  $region8: #{outconv3d_forward.1} parent=0 // loop_exit
    _

</llo_original>
